<compile_context>
chip_gen: v5e
topology: v5e:2x2
jax: 0.10.0
libtpu: 0.0.40
codegen_flags: <defaults>
</compile_context>

<pallas_src>
import math

import jax
import jax.numpy as jnp
from jax.experimental import pallas as pl
from jax.experimental.pallas import tpu as pltpu


# ---------------------------------------------------------------------------
# Fused MLP kernel: fc1 + ReLU + fc2 + ReLU + fc3 + sigmoid
# ---------------------------------------------------------------------------
def _irrigation_mlp_kernel(x_ref, w1_ref, b1_ref, w2_ref, b2_ref,
                           w3_ref, b3_ref, o_ref):
    """One grid step = one batch tile.

      x_ref  : (BM, 3)   VMEM  input tile
      w1_ref : (3, 16)   VMEM  fc1 weight (in, out)
      b1_ref : (1, 16)   VMEM
      w2_ref : (16, 8)   VMEM  fc2 weight (in, out)
      b2_ref : (1, 8)    VMEM
      w3_ref : (8, 1)    VMEM  fc3 weight (in, out)
      b3_ref : (1, 1)    VMEM
      o_ref  : (BM, 1)   VMEM  sigmoid output tile
    """
    x = x_ref[...]

    h1 = jnp.dot(x, w1_ref[...], preferred_element_type=jnp.float32)
    h1 = jnp.maximum(h1 + b1_ref[...], 0.0)

    h2 = jnp.dot(h1, w2_ref[...], preferred_element_type=jnp.float32)
    h2 = jnp.maximum(h2 + b2_ref[...], 0.0)

    z = jnp.dot(h2, w3_ref[...], preferred_element_type=jnp.float32) + b3_ref[...]

    # Sigmoid: exp runs on the EUP (its own bundle slot).
    o_ref[...] = (1.0 / (1.0 + jnp.exp(-z))).astype(o_ref.dtype)


def _round_up(v, m):
    return ((v + m - 1) // m) * m


def irrigation_nn_forward(x, params):
    """x: (N, 3) float32 -> (N, 1) float32, matching IrrigationNN.forward."""
    n, in_dim = x.shape
    assert in_dim == 3, in_dim

    # torch nn.Linear stores weights as (out, in); transpose once on host.
    w1 = params["fc1_w"].T.astype(jnp.float32)            # (3, 16)
    b1 = params["fc1_b"].reshape(1, -1).astype(jnp.float32)
    w2 = params["fc2_w"].T.astype(jnp.float32)            # (16, 8)
    b2 = params["fc2_b"].reshape(1, -1).astype(jnp.float32)
    w3 = params["fc3_w"].T.astype(jnp.float32)            # (8, 1)
    b3 = params["fc3_b"].reshape(1, -1).astype(jnp.float32)

    h1, h2, h3 = w1.shape[1], w2.shape[1], w3.shape[1]

    # Batch tile: multiple of 8 sublanes, capped at 128; pad batch to a
    # multiple of the tile so every block is full (no masked tail logic).
    bm = min(128, _round_up(n, 8))
    n_pad = _round_up(n, bm)
    x_p = jnp.pad(x.astype(jnp.float32), ((0, n_pad - n), (0, 0)))
    grid_m = n_pad // bm

    out = pl.pallas_call(
        _irrigation_mlp_kernel,
        out_shape=jax.ShapeDtypeStruct((n_pad, h3), jnp.float32),
        grid_spec=pltpu.PrefetchScalarGridSpec(
            num_scalar_prefetch=0,
            grid=(grid_m,),
            in_specs=[
                pl.BlockSpec((bm, in_dim), lambda i: (i, 0)),
                pl.BlockSpec((in_dim, h1), lambda i: (0, 0)),
                pl.BlockSpec((1, h1), lambda i: (0, 0)),
                pl.BlockSpec((h1, h2), lambda i: (0, 0)),
                pl.BlockSpec((1, h2), lambda i: (0, 0)),
                pl.BlockSpec((h2, h3), lambda i: (0, 0)),
                pl.BlockSpec((1, h3), lambda i: (0, 0)),
            ],
            out_specs=pl.BlockSpec((bm, h3), lambda i: (i, 0)),
        ),
        compiler_params=pltpu.CompilerParams(
            dimension_semantics=("parallel",)),
    )(x_p, w1, b1, w2, b2, w3, b3)

    return out[:n]


# ---------------------------------------------------------------------------
# Deterministic parameter init (PyTorch Linear default: U(-1/sqrt(fan_in), ...))
# ---------------------------------------------------------------------------
def init_params(key):
    keys = jax.random.split(key, 6)

    def uinit(k, shape, fan_in):
        bound = 1.0 / math.sqrt(fan_in)
        return jax.random.uniform(k, shape, jnp.float32, -bound, bound)

    return {
        "fc1_w": uinit(keys[0], (16, 3), 3),
        "fc1_b": uinit(keys[1], (16,), 3),
        "fc2_w": uinit(keys[2], (8, 16), 16),
        "fc2_b": uinit(keys[3], (8,), 16),
        "fc3_w": uinit(keys[4], (1, 8), 8),
        "fc3_b": uinit(keys[5], (1,), 8),
    }


# ---------------------------------------------------------------------------
# Pure-JAX reference (correctness sanity check)
# ---------------------------------------------------------------------------
def reference_forward(x, p):
    hi = jax.lax.Precision.HIGHEST
    h = jnp.maximum(jnp.dot(x, p["fc1_w"].T, precision=hi) + p["fc1_b"], 0.0)
    h = jnp.maximum(jnp.dot(h, p["fc2_w"].T, precision=hi) + p["fc2_b"], 0.0)
    z = jnp.dot(h, p["fc3_w"].T, precision=hi) + p["fc3_b"]
    return 1.0 / (1.0 + jnp.exp(-z))


if __name__ == "__main__":
    key = jax.random.PRNGKey(0)
    k_x, k_p = jax.random.split(key)

    # Small shapes implied by the module: in-features = 3, batch = 8.
    x = jax.random.uniform(k_x, (8, 3), dtype=jnp.float32)
    params = init_params(k_p)

    fwd = jax.jit(irrigation_nn_forward)
    out = jax.block_until_ready(fwd(x, params))

    assert out.shape == (8, 1), out.shape
    assert bool(jnp.all(jnp.isfinite(out)))
    assert bool(jnp.all((out >= 0.0) & (out <= 1.0)))   # sigmoid range

    ref = reference_forward(x, params)
    if not jnp.allclose(out, ref, rtol=1e-5, atol=1e-5):
        raise AssertionError(
            "mismatch vs reference: max|diff|="
            f"{float(jnp.max(jnp.abs(out - ref)))}")

    print("KERNEL_OK")
</pallas_src>

<mosaic_0001>
module attributes {stable_mosaic.version = 11 : i64} {
  func.func @_irrigation_mlp_kernel(%arg0: i32, %arg1: memref<8x3xf32, #tpu.memory_space<vmem>>, %arg2: memref<3x16xf32, #tpu.memory_space<vmem>>, %arg3: memref<1x16xf32, #tpu.memory_space<vmem>>, %arg4: memref<16x8xf32, #tpu.memory_space<vmem>>, %arg5: memref<1x8xf32, #tpu.memory_space<vmem>>, %arg6: memref<8x1xf32, #tpu.memory_space<vmem>>, %arg7: memref<1x1xf32, #tpu.memory_space<vmem>>, %arg8: memref<8x1xf32, #tpu.memory_space<vmem>>) attributes {dimension_semantics = [#tpu.dimension_semantics<parallel>], iteration_bounds = array<i64: 1>, scalar_prefetch = 0 : i64, scratch_operands = 0 : i64, tpu.core_type = #tpu.core_type<tc>, window_params = [{transform_indices = @transform_0, window_bounds = array<i64: 8, 3>}, {pipeline_mode = #tpu.pipeline_mode<synchronous>, transform_indices = @transform_1, window_bounds = array<i64: 3, 16>}, {pipeline_mode = #tpu.pipeline_mode<synchronous>, transform_indices = @transform_2, window_bounds = array<i64: 1, 16>}, {pipeline_mode = #tpu.pipeline_mode<synchronous>, transform_indices = @transform_3, window_bounds = array<i64: 16, 8>}, {pipeline_mode = #tpu.pipeline_mode<synchronous>, transform_indices = @transform_4, window_bounds = array<i64: 1, 8>}, {pipeline_mode = #tpu.pipeline_mode<synchronous>, transform_indices = @transform_5, window_bounds = array<i64: 8, 1>}, {pipeline_mode = #tpu.pipeline_mode<synchronous>, transform_indices = @transform_6, window_bounds = array<i64: 1, 1>}, {transform_indices = @transform_7, window_bounds = array<i64: 8, 1>}]} {
    %c0 = arith.constant 0 : index
    %c0_0 = arith.constant 0 : index
    %0 = vector.load %arg1[%c0, %c0_0] : memref<8x3xf32, #tpu.memory_space<vmem>>, vector<8x3xf32>
    %c0_1 = arith.constant 0 : index
    %c0_2 = arith.constant 0 : index
    %1 = vector.load %arg2[%c0_1, %c0_2] : memref<3x16xf32, #tpu.memory_space<vmem>>, vector<3x16xf32>
    %cst = arith.constant dense<0.000000e+00> : vector<8x16xf32>
    %2 = tpu.matmul %0, %1, %cst {dimension_numbers = #tpu.dot_dimension_numbers<[1], [0], [0], [1], [0, 0, 1, 1], [], []>} : vector<8x3xf32>, vector<3x16xf32>, vector<8x16xf32> -> vector<8x16xf32>
    %c0_3 = arith.constant 0 : index
    %c0_4 = arith.constant 0 : index
    %3 = vector.load %arg3[%c0_3, %c0_4] : memref<1x16xf32, #tpu.memory_space<vmem>>, vector<1x16xf32>
    %4 = vector.broadcast %3 : vector<1x16xf32> to vector<8x16xf32>
    %5 = arith.addf %2, %4 : vector<8x16xf32>
    %cst_5 = arith.constant 0.000000e+00 : f32
    %6 = vector.broadcast %cst_5 : f32 to vector<8x16xf32>
    %7 = arith.maximumf %5, %6 : vector<8x16xf32>
    %c0_6 = arith.constant 0 : index
    %c0_7 = arith.constant 0 : index
    %8 = vector.load %arg4[%c0_6, %c0_7] : memref<16x8xf32, #tpu.memory_space<vmem>>, vector<16x8xf32>
    %cst_8 = arith.constant dense<0.000000e+00> : vector<8x8xf32>
    %9 = tpu.matmul %7, %8, %cst_8 {dimension_numbers = #tpu.dot_dimension_numbers<[1], [0], [0], [1], [0, 0, 1, 1], [], []>} : vector<8x16xf32>, vector<16x8xf32>, vector<8x8xf32> -> vector<8x8xf32>
    %c0_9 = arith.constant 0 : index
    %c0_10 = arith.constant 0 : index
    %10 = vector.load %arg5[%c0_9, %c0_10] : memref<1x8xf32, #tpu.memory_space<vmem>>, vector<1x8xf32>
    %11 = vector.broadcast %10 : vector<1x8xf32> to vector<8x8xf32>
    %12 = arith.addf %9, %11 : vector<8x8xf32>
    %cst_11 = arith.constant 0.000000e+00 : f32
    %13 = vector.broadcast %cst_11 : f32 to vector<8x8xf32>
    %14 = arith.maximumf %12, %13 : vector<8x8xf32>
    %c0_12 = arith.constant 0 : index
    %c0_13 = arith.constant 0 : index
    %15 = vector.load %arg6[%c0_12, %c0_13] : memref<8x1xf32, #tpu.memory_space<vmem>>, vector<8x1xf32>
    %cst_14 = arith.constant dense<0.000000e+00> : vector<8x1xf32>
    %16 = tpu.matmul %14, %15, %cst_14 {dimension_numbers = #tpu.dot_dimension_numbers<[1], [0], [0], [1], [0, 0, 1, 1], [], []>} : vector<8x8xf32>, vector<8x1xf32>, vector<8x1xf32> -> vector<8x1xf32>
    %c0_15 = arith.constant 0 : index
    %c0_16 = arith.constant 0 : index
    %17 = vector.load %arg7[%c0_15, %c0_16] : memref<1x1xf32, #tpu.memory_space<vmem>>, vector<1x1xf32>
    %18 = vector.broadcast %17 : vector<1x1xf32> to vector<8x1xf32>
    %19 = arith.addf %16, %18 : vector<8x1xf32>
    %cst_17 = arith.constant 0.000000e+00 : f32
    %20 = vector.broadcast %cst_17 : f32 to vector<8x1xf32>
    %21 = arith.subf %20, %19 : vector<8x1xf32>
    %22 = math.exp %21 : vector<8x1xf32>
    %cst_18 = arith.constant 1.000000e+00 : f32
    %23 = vector.broadcast %cst_18 : f32 to vector<8x1xf32>
    %24 = arith.addf %23, %22 : vector<8x1xf32>
    %cst_19 = arith.constant 1.000000e+00 : f32
    %25 = vector.broadcast %cst_19 : f32 to vector<8x1xf32>
    %26 = arith.divf %25, %24 : vector<8x1xf32>
    %c0_20 = arith.constant 0 : index
    %c0_21 = arith.constant 0 : index
    %27 = vector.load %arg8[%c0_20, %c0_21] : memref<8x1xf32, #tpu.memory_space<vmem>>, vector<8x1xf32>
    tpu.vector_store %arg8[%c0_20, %c0_21], %26 {strides = array<i32>} : memref<8x1xf32, #tpu.memory_space<vmem>>, vector<8x1xf32>,
    return
  }
  func.func @transform_0(%arg0: i32) -> (i32, i32) {
    %c0_i32 = arith.constant 0 : i32
    %c0_i32_0 = arith.constant 0 : i32
    return %arg0, %c0_i32 : i32, i32
  }
  func.func @transform_1(%arg0: i32) -> (i32, i32) {
    %c0_i32 = arith.constant 0 : i32
    %c0_i32_0 = arith.constant 0 : i32
    %c0_i32_1 = arith.constant 0 : i32
    return %c0_i32, %c0_i32_0 : i32, i32
  }
  func.func @transform_2(%arg0: i32) -> (i32, i32) {
    %c0_i32 = arith.constant 0 : i32
    %c0_i32_0 = arith.constant 0 : i32
    %c0_i32_1 = arith.constant 0 : i32
    return %c0_i32, %c0_i32_0 : i32, i32
  }
  func.func @transform_3(%arg0: i32) -> (i32, i32) {
    %c0_i32 = arith.constant 0 : i32
    %c0_i32_0 = arith.constant 0 : i32
    %c0_i32_1 = arith.constant 0 : i32
    return %c0_i32, %c0_i32_0 : i32, i32
  }
  func.func @transform_4(%arg0: i32) -> (i32, i32) {
    %c0_i32 = arith.constant 0 : i32
    %c0_i32_0 = arith.constant 0 : i32
    %c0_i32_1 = arith.constant 0 : i32
    return %c0_i32, %c0_i32_0 : i32, i32
  }
  func.func @transform_5(%arg0: i32) -> (i32, i32) {
    %c0_i32 = arith.constant 0 : i32
    %c0_i32_0 = arith.constant 0 : i32
    %c0_i32_1 = arith.constant 0 : i32
    return %c0_i32, %c0_i32_0 : i32, i32
  }
  func.func @transform_6(%arg0: i32) -> (i32, i32) {
    %c0_i32 = arith.constant 0 : i32
    %c0_i32_0 = arith.constant 0 : i32
    %c0_i32_1 = arith.constant 0 : i32
    return %c0_i32, %c0_i32_0 : i32, i32
  }
  func.func @transform_7(%arg0: i32) -> (i32, i32) {
    %c0_i32 = arith.constant 0 : i32
    %c0_i32_0 = arith.constant 0 : i32
    return %arg0, %c0_i32 : i32, i32
  }
}

</mosaic_0001>

<llo_original>
// kernel: irrigation_nn_forward.1
$region0: #{irrigation_nn_forward.1}
  #allocation0 [shape = 'u32[]', space=smem, size = 0x4, offset = 0x4, fixed_abs, tag = 'smem constant byte address 0x4 - core index']
  #allocation1 [shape = 'u32[72,128]{1,0:T(1,128)}', space=vmem, size = 0x9000, scoped, tag = 'internal scratch']
  #allocation2 [shape = 'f32[1,1]{1,0:T(1,128)S(1)}', space=vmem, size = 0x200, scoped, tag = 'scoped memory for irrigation_nn_forward.1']
  %s0 = inlined_call_operand.vmem [shape: f32[8,3], index: 0, kind: input, shape index: {}]
  %s1 = inlined_call_operand.vmem [shape: f32[3,16], index: 1, kind: input, shape index: {}]
  %s2 = inlined_call_operand.vmem [shape: f32[1,16], index: 2, kind: input, shape index: {}]
  %s3 = inlined_call_operand.vmem [shape: f32[16,8], index: 3, kind: input, shape index: {}]
  %s4 = inlined_call_operand.vmem [shape: f32[1,8], index: 4, kind: input, shape index: {}]
  %s5 = inlined_call_operand.vmem [shape: f32[8,1], index: 5, kind: input, shape index: {}]
  %s6 = inlined_call_operand.<no memory space> [shape: f32[1,1], index: 6, kind: input, shape index: {}]
  %s7 = inlined_call_operand.vmem [shape: f32[8,1], index: 7, kind: output, shape index: {}]
  %s8 = sld [smem:[#allocation0]]
  $region38: #{irrigation_nn_forward.1} parent=0
    _
  %s10 = ssub.s32 1, %s8
  %s11 = scalar_select 0, %s10, %s8
  %v12 = vstv %s6
  %13 = vst [vmem:[#allocation2] sm:$0x1] %v12
  // Predicated region
  $region2: #{irrigation_nn_forward.1} parent=0 // pred_check
    _
  $region3: #{irrigation_nn_forward.1} parent=0 // pred_check_branch
    %15 = sbr.rel (0) target = $region5
  $region4: #{irrigation_nn_forward.1} parent=0 // pred_region
    _
  $region5: #{irrigation_nn_forward.1} parent=0 // pred_fallthru
    _
  // Predicated region
  $region6: #{irrigation_nn_forward.1} parent=0 // pred_check
    _
  $region7: #{irrigation_nn_forward.1} parent=0 // pred_check_branch
    %17 = sbr.rel (0) target = $region9
  $region8: #{irrigation_nn_forward.1} parent=0 // pred_region
    _
  $region9: #{irrigation_nn_forward.1} parent=0 // pred_fallthru
    _
  // Predicated region
  $region10: #{irrigation_nn_forward.1} parent=0 // pred_check
    _
  $region11: #{irrigation_nn_forward.1} parent=0 // pred_check_branch
    %19 = sbr.rel (0) target = $region13
  $region12: #{irrigation_nn_forward.1} parent=0 // pred_region
    _
  $region13: #{irrigation_nn_forward.1} parent=0 // pred_fallthru
    _
  // Predicated region
  $region14: #{irrigation_nn_forward.1} parent=0 // pred_check
    _
  $region15: #{irrigation_nn_forward.1} parent=0 // pred_check_branch
    %21 = sbr.rel (0) target = $region17
  $region16: #{irrigation_nn_forward.1} parent=0 // pred_region
    _
  $region17: #{irrigation_nn_forward.1} parent=0 // pred_fallthru
    _
  // Predicated region
  $region18: #{irrigation_nn_forward.1} parent=0 // pred_check
    _
  $region19: #{irrigation_nn_forward.1} parent=0 // pred_check_branch
    %23 = sbr.rel (0) target = $region21
  $region20: #{irrigation_nn_forward.1} parent=0 // pred_region
    _
  $region21: #{irrigation_nn_forward.1} parent=0 // pred_fallthru
    _
  // Predicated region
  $region22: #{irrigation_nn_forward.1} parent=0 // pred_check
    _
  $region23: #{irrigation_nn_forward.1} parent=0 // pred_check_branch
    %25 = sbr.rel (0) target = $region25
  $region24: #{irrigation_nn_forward.1} parent=0 // pred_region
    _
  $region25: #{irrigation_nn_forward.1} parent=0 // pred_fallthru
    _
  // Predicated region
  $region26: #{irrigation_nn_forward.1} parent=0 // pred_check
    _
  $region27: #{irrigation_nn_forward.1} parent=0 // pred_check_branch
    %27 = sbr.rel (0) target = $region29
  $region28: #{irrigation_nn_forward.1} parent=0 // pred_region
    _
  $region29: #{irrigation_nn_forward.1} parent=0 // pred_fallthru
    _
  %v28 = vld [vmem:[%s0] sm:$0xff]
  %v29 = vld [vmem:[%s1] sm:$0x7]
  %v30 = vld [vmem:[%s2] sm:$0x1]
  %v32 = vperm.slane %v30, 0
  %vm34 = vcmask 23552
  %v36 = vsel %vm34, %v28, 0
  %vm38 = vcmask 1042432
  %v40 = vsel %vm38, %v29, 0
  %42 = vmatpush.msra.mxu0 0.0
  %43 = vmatpush.msra.mxu0 0.0
  %44 = vmatpush.msra.mxu0 0.0
  %45 = vmatpush.msra.mxu0 0.0
  %46 = vmatpush.msra.mxu0 0.0
  %47 = vmatpush.msra.mxu0 0.0
  %48 = vmatpush.msra.mxu0 0.0
  %49 = vmatpush.msra.mxu0 0.0
  %50 = vmatpush.msra.mxu0 0.0
  %51 = vmatpush.msra.mxu0 0.0
  %52 = vmatpush.msra.mxu0 0.0
  %53 = vmatpush.msra.mxu0 0.0
  %54 = vmatpush.msra.mxu0 0.0
  %55 = vmatpush.msra.mxu0 0.0
  %56 = vmatpush.msra.mxu0 0.0
  %57 = vmatpush.msra.mxu0 %v40
  %58 = vmatmul.f32.gmra.mxu0 %v36
  %v59 = vpop.f32.mrf.mxu0
  %v60 = vadd.f32 %v32, %v59
  %61 = vdwg.mxu0
  %v62 = vmax.f32 %v60, 0.0
  %v63 = vld [vmem:[%s3] sm:$0xff]
  %v64 = vld [vmem:[%s3 + $0x8] sm:$0xff]
  %v65 = vld [vmem:[%s4] sm:$0x1]
  %v67 = vperm.slane %v65, 0
  %vm69 = vcmask 130048
  %v71 = vsel %vm69, %v62, 0
  %73 = vmatpush.msra.mxu0 0.0
  %74 = vmatpush.msra.mxu0 0.0
  %75 = vmatpush.msra.mxu0 0.0
  %76 = vmatpush.msra.mxu0 0.0
  %77 = vmatpush.msra.mxu0 0.0
  %78 = vmatpush.msra.mxu0 0.0
  %79 = vmatpush.msra.mxu0 0.0
  %80 = vmatpush.msra.mxu0 0.0
  %81 = vmatpush.msra.mxu0 0.0
  %82 = vmatpush.msra.mxu0 0.0
  %83 = vmatpush.msra.mxu0 0.0
  %84 = vmatpush.msra.mxu0 0.0
  %85 = vmatpush.msra.mxu0 0.0
  %86 = vmatpush.msra.mxu0 0.0
  %87 = vmatpush.msra.mxu0 %v64
  %88 = vmatpush.msra.mxu0 %v63
  %89 = vmatmul.f32.gmra.mxu0 %v71
  %v90 = vpop.f32.mrf.mxu0
  %v91 = vadd.f32 %v67, %v90
  %92 = vdwg.mxu0
  %v93 = vmax.f32 %v91, 0.0
  %v94 = vld [vmem:[%s5] sm:$0xff]
  %v95 = vld [vmem:[#allocation2] sm:$0x1]
  %v97 = vperm.slane %v95, 0
  %vm99 = vcmask 64512
  %v101 = vsel %vm99, %v93, 0
  %103 = vmatpush.msra.mxu0 0.0
  %104 = vmatpush.msra.mxu0 0.0
  %105 = vmatpush.msra.mxu0 0.0
  %106 = vmatpush.msra.mxu0 0.0
  %107 = vmatpush.msra.mxu0 0.0
  %108 = vmatpush.msra.mxu0 0.0
  %109 = vmatpush.msra.mxu0 0.0
  %110 = vmatpush.msra.mxu0 0.0
  %111 = vmatpush.msra.mxu0 0.0
  %112 = vmatpush.msra.mxu0 0.0
  %113 = vmatpush.msra.mxu0 0.0
  %114 = vmatpush.msra.mxu0 0.0
  %115 = vmatpush.msra.mxu0 0.0
  %116 = vmatpush.msra.mxu0 0.0
  %117 = vmatpush.msra.mxu0 0.0
  %118 = vmatpush.msra.mxu0 %v94
  %119 = vmatmul.f32.gmra.mxu0 %v101
  %v120 = vpop.f32.mrf.mxu0
  %v121 = vadd.f32 %v97, %v120
  %122 = vdwg.mxu0
  %v123 = vsub.f32 0.0, %v121
  %v124 = vmul.f32 %v123, 1.442695
  %v125 = vpow.pop %v124
  %v126 = vadd.f32 %v125, 1.0
  %v127 = vrcp.pop %v126
  %v128 = vmul.f32 %v126, %v127
  %v129 = vsub.f32 1.0, %v128
  %v130 = vmul.f32 %v127, %v129
  %v131 = vadd.f32 %v127, %v130
  %vm132 = vweird.f32 %v126
  %vm133 = vweird.f32 %v127
  %vm134 = vmor %vm132, %vm133
  %v135 = vsel %vm134, %v127, %v131
  %v136 = vand.u32 2147483647, %v126
  %vm137 = vcmp.eq.f32.partialorder %v136, 8.507059e+37
  %v138 = vand.u32 %v126, 2147483648
  %v139 = vor.u32 1.1754944e-38, %v138
  %v140 = vsel %vm137, %v139, %v135
  %v141 = vmul.f32 1.0, %v140
  %vm142 = vcmask 7168
  %143 = vst.msk [vmem:[%s7] sm:$0xff] %vm142, %v141
  // Predicated region
  $region30: #{irrigation_nn_forward.1} parent=0 // pred_check
    _
  $region31: #{irrigation_nn_forward.1} parent=0 // pred_check_branch
    %145 = sbr.rel (0) target = $region33
  $region32: #{irrigation_nn_forward.1} parent=0 // pred_region
    _
  $region33: #{irrigation_nn_forward.1} parent=0 // pred_fallthru
    _
  // Predicated region
  $region34: #{irrigation_nn_forward.1} parent=0 // pred_check
    _
  $region35: #{irrigation_nn_forward.1} parent=0 // pred_check_branch
    %147 = sbr.rel (0) target = $region37
  $region36: #{irrigation_nn_forward.1} parent=0 // pred_region
    _
  $region37: #{irrigation_nn_forward.1} parent=0 // pred_fallthru
    _

</llo_original>
